<compile_context>
chip_gen: v7x
topology: tpu7x:2x2x1
jax: 0.10.0
libtpu: 0.0.40
codegen_flags: <defaults>
</compile_context>

<pallas_src>
import functools

import jax
import jax.numpy as jnp
import numpy as np
from jax.experimental import pallas as pl
from jax.experimental.pallas import tpu as pltpu


# ----------------------------------------------------------------------------
# helpers
# ----------------------------------------------------------------------------
def _vmem_budget_bytes():
    """Generation-aware VMEM capacity (v7x: 64 MiB physical; v5e/v6e: 128 MiB)."""
    try:
        return int(pltpu.get_tpu_info().vmem_capacity_bytes)
    except Exception:
        return 64 * 1024 * 1024   # conservative fallback works on every gen


def _make_conv_bn_kernel(KH, Ho, stride):
    """Kernel body closed over the static tap-row geometry."""
    def kernel(x_ref, w_ref, b_ref, o_ref):
        # x_ref: (Hp, Wp*Cin)          bf16 padded input rows, (w, cin) flattened
        # w_ref: (KH, Wp*Cin, Cout*Wo) bf16 banded, BN-folded weight (resident)
        # b_ref: (1, Cout*Wo)          f32  BN bias row (each bias repeated Wo x)
        # o_ref: (Ho, Cout*Wo)         f32  conv+BN output rows for this image
        x = x_ref[...]                       # one VMEM load of the whole image
        acc = None
        for i in range(KH):                  # statically unrolled tap rows
            if stride == 1:
                rows = x[i:i + Ho, :]                              # [Ho, Wp*Cin]
            else:
                # TODO(synk): strided-H path is correct but not exercised here.
                rows = x[i:i + (Ho - 1) * stride + 1:stride, :]
            part = jnp.dot(rows, w_ref[i],                         # [Ho, Cout*Wo]
                           preferred_element_type=jnp.float32)
            acc = part if acc is None else acc + part
        o_ref[...] = (acc + b_ref[...]).astype(o_ref.dtype)
    return kernel


# ----------------------------------------------------------------------------
# forward: fused (conv + eval-BN) via banded-weight row matmuls
# ----------------------------------------------------------------------------
@functools.partial(jax.jit, static_argnames=("stride", "pad", "eps"))
def _forward(x_nchw, conv_weight, bn_gamma, bn_beta, bn_mean, bn_var, *,
             stride, pad, eps):
    N, Cin, H, W = x_nchw.shape
    Cout, _, KH, KW = conv_weight.shape
    Hp, Wp = H + 2 * pad, W + 2 * pad
    Ho = (Hp - KH) // stride + 1
    Wo = (Wp - KW) // stride + 1

    # ---- fold eval-mode BN into the conv weight and a bias vector (f32 math)
    inv_std = jax.lax.rsqrt(bn_var.astype(jnp.float32) + eps)
    scale = bn_gamma.astype(jnp.float32) * inv_std                      # [Cout]
    bias = bn_beta.astype(jnp.float32) - bn_mean.astype(jnp.float32) * scale

    # [Cout, Cin, KH, KW] -> [KH, KW, Cin, Cout], BN scale folded in.
    w_f = jnp.transpose(conv_weight.astype(jnp.float32), (2, 3, 1, 0)) * scale

    # ---- banded weight: BigW[i, wp*Cin+ci, co*Wo+wo] = w_f[i, wp-wo*s, ci, co]
    sel = np.zeros((KW, Wp, Wo), np.float32)        # static 0/1 band selector
    for j in range(KW):
        for wo in range(Wo):
            sel[j, wo * stride + j, wo] = 1.0
    bigw = jnp.einsum("jpw,ijcd->ipcdw", jnp.asarray(sel), w_f)
    bigw = bigw.reshape(KH, Wp * Cin, Cout * Wo).astype(jnp.bfloat16)
    bias_row = jnp.repeat(bias, Wo).reshape(1, Cout * Wo).astype(jnp.float32)

    # ---- input: NCHW -> padded NHWC -> [N, Hp, Wp*Cin]  (O(input) transform;
    #      no 9x im2col patch matrix is written to HBM)
    x_nhwc = jnp.transpose(x_nchw.astype(jnp.bfloat16), (0, 2, 3, 1))
    x_pad = jnp.pad(x_nhwc, ((0, 0), (pad, pad), (pad, pad), (0, 0)))
    x_rows = x_pad.reshape(N, Hp, Wp * Cin)

    # ---- static VMEM plan: everything per grid step, with headroom
    x_blk = Hp * Wp * Cin * 2
    w_blk = KH * Wp * Cin * Cout * Wo * 2
    o_blk = Ho * Cout * Wo * 4
    b_blk = Cout * Wo * 4
    need = 2 * (x_blk + w_blk + o_blk + b_blk)          # double-buffered pipeline
    budget = _vmem_budget_bytes()
    assert need <= int(budget * 0.6), (
        "per-step VMEM footprint too large for the single-strip fused-im2col "
        "path; add row-strip tiling (see TODO) for these shapes")
    vmem_limit = int(min(max(4 * need, 8 << 20), int(budget * 0.5)))

    kernel = _make_conv_bn_kernel(KH, Ho, stride)
    out_flat = pl.pallas_call(
        kernel,
        out_shape=jax.ShapeDtypeStruct((N, Ho, Cout * Wo), jnp.float32),
        grid_spec=pltpu.PrefetchScalarGridSpec(
            num_scalar_prefetch=0,
            grid=(N,),                                   # natural batch grid
            in_specs=[
                pl.BlockSpec((None, Hp, Wp * Cin), lambda n: (n, 0, 0)),
                pl.BlockSpec((KH, Wp * Cin, Cout * Wo), lambda n: (0, 0, 0)),
                pl.BlockSpec((1, Cout * Wo), lambda n: (0, 0)),
            ],
            out_specs=pl.BlockSpec((None, Ho, Cout * Wo), lambda n: (n, 0, 0)),
        ),
        compiler_params=pltpu.CompilerParams(
            dimension_semantics=("parallel",),
            vmem_limit_bytes=vmem_limit),
        cost_estimate=pl.CostEstimate(
            flops=2 * N * Ho * Wo * KH * KW * Cin * Cout,
            transcendentals=0,
            bytes_accessed=(x_rows.size * 2 + bigw.size * 2
                            + bias_row.size * 4 + N * Ho * Cout * Wo * 4)),
    )(x_rows, bigw, bias_row)

    # [N, Ho, Cout*Wo] -> [N, Ho, Cout, Wo] -> NCHW (minor dim Wo preserved,
    # so the transpose only permutes major dims)
    out = out_flat.reshape(N, Ho, Cout, Wo)
    return jnp.transpose(out, (0, 2, 1, 3))


def pruned_conv2d_bn_middle(x_nchw, conv_weight, bn_gamma, bn_beta, bn_mean,
                            bn_var, *, stride, pad, eps=1e-5):
    """x_nchw: [N, Cin_pruned, H, W]; conv_weight: [Cout_pruned, Cin_pruned, KH, KW]."""
    N, Cin, H, W = x_nchw.shape
    Cout, Cin_w, KH, KW = conv_weight.shape
    assert Cin == Cin_w
    return _forward(x_nchw, conv_weight, bn_gamma, bn_beta, bn_mean, bn_var,
                    stride=int(stride), pad=int(pad), eps=float(eps))


# ----------------------------------------------------------------------------
# main: deterministic params, run once, verify against pure-JAX reference
# ----------------------------------------------------------------------------
if __name__ == "__main__":
    key = jax.random.PRNGKey(0)
    k1, k2, k3, k4, k5, k6 = jax.random.split(key, 6)

    # original (un-pruned) module had 8 in / 8 out channels; pruned to 4 / 4.
    # (in_index / out_index select the surviving channels; the module stores
    #  out_index / oriout_channels but its forward does not use them.)
    in_index = jnp.array([0, 2, 5, 7], jnp.int32)
    out_index = jnp.array([1, 3, 4, 6], jnp.int32)
    Cin_p, Cout_p = 4, 4
    KH = KW = 3
    stride, pad = 1, 1

    N, H, W = 2, 16, 16
    x = jax.random.normal(k1, (N, Cin_p, H, W), jnp.float32)   # input: [2,4,16,16]

    conv_w = jax.random.normal(k2, (Cout_p, Cin_p, KH, KW), jnp.float32) * 0.1
    bn_gamma = jax.random.uniform(k3, (Cout_p,), jnp.float32, 0.5, 1.5)
    bn_beta = jax.random.normal(k4, (Cout_p,), jnp.float32) * 0.1
    bn_mean = jax.random.normal(k5, (Cout_p,), jnp.float32) * 0.1
    bn_var = jax.random.uniform(k6, (Cout_p,), jnp.float32, 0.5, 1.5)

    out = pruned_conv2d_bn_middle(x, conv_w, bn_gamma, bn_beta, bn_mean, bn_var,
                                  stride=stride, pad=pad)
    out = jax.block_until_ready(out)

    # pure-JAX f32 reference (same eval-mode BN semantics as the PyTorch module)
    ref_conv = jax.lax.conv_general_dilated(
        x, conv_w, window_strides=(stride, stride),
        padding=((pad, pad), (pad, pad)),
        dimension_numbers=("NCHW", "OIHW", "NCHW"))
    inv_std = 1.0 / jnp.sqrt(bn_var + 1e-5)
    ref = (ref_conv - bn_mean[None, :, None, None]) * inv_std[None, :, None, None] \
          * bn_gamma[None, :, None, None] + bn_beta[None, :, None, None]

    assert out.shape == (N, Cout_p, H, W)
    # kernel uses bf16 activation/weight streams (f32 accumulation) -> looser tol
    np.testing.assert_allclose(np.asarray(out), np.asarray(ref),
                               rtol=2e-2, atol=3e-2)
    print("KERNEL_OK")
</pallas_src>

<mosaic_0001>
module attributes {stable_mosaic.version = 11 : i64} {
  func.func @kernel(%arg0: i32, %arg1: memref<1x18x72xbf16, #tpu.memory_space<vmem>>, %arg2: memref<3x72x64xbf16, #tpu.memory_space<vmem>>, %arg3: memref<1x64xf32, #tpu.memory_space<vmem>>, %arg4: memref<1x16x64xf32, #tpu.memory_space<vmem>>) attributes {dimension_semantics = [#tpu.dimension_semantics<parallel>], iteration_bounds = array<i64: 2>, scalar_prefetch = 0 : i64, scratch_operands = 0 : i64, tpu.core_type = #tpu.core_type<tc>, window_params = [{transform_indices = @transform_0, window_bounds = array<i64: 1, 18, 72>}, {pipeline_mode = #tpu.pipeline_mode<synchronous>, transform_indices = @transform_1, window_bounds = array<i64: 3, 72, 64>}, {pipeline_mode = #tpu.pipeline_mode<synchronous>, transform_indices = @transform_2, window_bounds = array<i64: 1, 64>}, {transform_indices = @transform_3, window_bounds = array<i64: 1, 16, 64>}]} {
    %c0 = arith.constant 0 : index
    %c0_0 = arith.constant 0 : index
    %c0_1 = arith.constant 0 : index
    %0 = vector.load %arg1[%c0, %c0_0, %c0_1] : memref<1x18x72xbf16, #tpu.memory_space<vmem>>, vector<1x18x72xbf16>
    %1 = vector.shape_cast %0 : vector<1x18x72xbf16> to vector<18x72xbf16>
    %2 = vector.extract_strided_slice %1 {offsets = [0, 0], sizes = [16, 72], strides = [1, 1]} : vector<18x72xbf16> to vector<16x72xbf16>
    %c0_2 = arith.constant 0 : index
    %c0_3 = arith.constant 0 : index
    %c0_4 = arith.constant 0 : index
    %3 = vector.load %arg2[%c0_2, %c0_3, %c0_4] : memref<3x72x64xbf16, #tpu.memory_space<vmem>>, vector<1x72x64xbf16>
    %4 = vector.shape_cast %3 : vector<1x72x64xbf16> to vector<72x64xbf16>
    %cst = arith.constant dense<0.000000e+00> : vector<16x64xf32>
    %5 = tpu.matmul %2, %4, %cst {dimension_numbers = #tpu.dot_dimension_numbers<[1], [0], [0], [1], [0, 0, 1, 1], [], []>} : vector<16x72xbf16>, vector<72x64xbf16>, vector<16x64xf32> -> vector<16x64xf32>
    %6 = vector.extract_strided_slice %1 {offsets = [1, 0], sizes = [16, 72], strides = [1, 1]} : vector<18x72xbf16> to vector<16x72xbf16>
    %c1 = arith.constant 1 : index
    %c0_5 = arith.constant 0 : index
    %c0_6 = arith.constant 0 : index
    %7 = vector.load %arg2[%c1, %c0_5, %c0_6] : memref<3x72x64xbf16, #tpu.memory_space<vmem>>, vector<1x72x64xbf16>
    %8 = vector.shape_cast %7 : vector<1x72x64xbf16> to vector<72x64xbf16>
    %cst_7 = arith.constant dense<0.000000e+00> : vector<16x64xf32>
    %9 = tpu.matmul %6, %8, %cst_7 {dimension_numbers = #tpu.dot_dimension_numbers<[1], [0], [0], [1], [0, 0, 1, 1], [], []>} : vector<16x72xbf16>, vector<72x64xbf16>, vector<16x64xf32> -> vector<16x64xf32>
    %10 = arith.addf %5, %9 : vector<16x64xf32>
    %11 = vector.extract_strided_slice %1 {offsets = [2, 0], sizes = [16, 72], strides = [1, 1]} : vector<18x72xbf16> to vector<16x72xbf16>
    %c2 = arith.constant 2 : index
    %c0_8 = arith.constant 0 : index
    %c0_9 = arith.constant 0 : index
    %12 = vector.load %arg2[%c2, %c0_8, %c0_9] : memref<3x72x64xbf16, #tpu.memory_space<vmem>>, vector<1x72x64xbf16>
    %13 = vector.shape_cast %12 : vector<1x72x64xbf16> to vector<72x64xbf16>
    %cst_10 = arith.constant dense<0.000000e+00> : vector<16x64xf32>
    %14 = tpu.matmul %11, %13, %cst_10 {dimension_numbers = #tpu.dot_dimension_numbers<[1], [0], [0], [1], [0, 0, 1, 1], [], []>} : vector<16x72xbf16>, vector<72x64xbf16>, vector<16x64xf32> -> vector<16x64xf32>
    %15 = arith.addf %10, %14 : vector<16x64xf32>
    %c0_11 = arith.constant 0 : index
    %c0_12 = arith.constant 0 : index
    %16 = vector.load %arg3[%c0_11, %c0_12] : memref<1x64xf32, #tpu.memory_space<vmem>>, vector<1x64xf32>
    %17 = vector.broadcast %16 : vector<1x64xf32> to vector<16x64xf32>
    %18 = arith.addf %15, %17 : vector<16x64xf32>
    %c0_13 = arith.constant 0 : index
    %c0_14 = arith.constant 0 : index
    %c0_15 = arith.constant 0 : index
    %19 = vector.load %arg4[%c0_13, %c0_14, %c0_15] : memref<1x16x64xf32, #tpu.memory_space<vmem>>, vector<1x16x64xf32>
    %20 = vector.shape_cast %19 : vector<1x16x64xf32> to vector<16x64xf32>
    %21 = vector.shape_cast %18 : vector<16x64xf32> to vector<1x16x64xf32>
    tpu.vector_store %arg4[%c0_13, %c0_14, %c0_15], %21 {strides = array<i32>} : memref<1x16x64xf32, #tpu.memory_space<vmem>>, vector<1x16x64xf32>,
    return
  }
  func.func @transform_0(%arg0: i32) -> (i32, i32, i32) {
    %c0_i32 = arith.constant 0 : i32
    %c0_i32_0 = arith.constant 0 : i32
    %c0_i32_1 = arith.constant 0 : i32
    return %arg0, %c0_i32, %c0_i32_0 : i32, i32, i32
  }
  func.func @transform_1(%arg0: i32) -> (i32, i32, i32) {
    %c0_i32 = arith.constant 0 : i32
    %c0_i32_0 = arith.constant 0 : i32
    %c0_i32_1 = arith.constant 0 : i32
    %c0_i32_2 = arith.constant 0 : i32
    return %c0_i32, %c0_i32_0, %c0_i32_1 : i32, i32, i32
  }
  func.func @transform_2(%arg0: i32) -> (i32, i32) {
    %c0_i32 = arith.constant 0 : i32
    %c0_i32_0 = arith.constant 0 : i32
    %c0_i32_1 = arith.constant 0 : i32
    return %c0_i32, %c0_i32_0 : i32, i32
  }
  func.func @transform_3(%arg0: i32) -> (i32, i32, i32) {
    %c0_i32 = arith.constant 0 : i32
    %c0_i32_0 = arith.constant 0 : i32
    %c0_i32_1 = arith.constant 0 : i32
    return %arg0, %c0_i32, %c0_i32_0 : i32, i32, i32
  }
}

</mosaic_0001>

<llo_original>
// kernel: _forward.1
$region0: #{_forward.1}
  #allocation0 [shape = 'u32[]', space=smem, size = 0x4, offset = 0x4, fixed_abs, tag = 'smem constant byte address 0x4 - core index']
  #allocation1 [shape = 'u32[144,128]{1,0:T(1,128)}', space=vmem, size = 0x12000, scoped, tag = 'internal scratch']
  %s0 = inlined_call_operand.vmem [shape: bf16[2,18,72], index: 0, kind: input, shape index: {}]
  %s1 = inlined_call_operand.vmem [shape: bf16[3,72,64], index: 1, kind: input, shape index: {}]
  %s2 = inlined_call_operand.vmem [shape: f32[1,64], index: 2, kind: input, shape index: {}]
  %s3 = inlined_call_operand.vmem [shape: f32[2,16,64], index: 3, kind: output, shape index: {}]
  %s4 = sld [smem:[#allocation0]]
  $region45: #{_forward.1} parent=0
    _
  %s6 = ssub.s32 1, %s4
  %s7 = scalar_select 0, %s6, %s4
  loop: start=0, step=1, limit=4
  $region2: #{_forward.1} parent=0 // loop_pre_header
    _
  $region3: #{_forward.1} parent=0 // loop_header
    %s9 = sphi 0, %s13
    %p10 = scmp.ge.s32.totalorder %s9, 4
    %s19 = sphi 0, %s21
    %s22 = sphi 0, %s19
    %s23 = sphi 0, %s22
    %s39 = sphi 0, %s23
    %s43 = sphi 0, %s43
    %s45 = sphi 0, %s43
    %s46 = sphi 0, %s45
    %s60 = sphi 0, %s46
    %s64 = sphi 0, %s64
    %s66 = sphi 0, %s64
    %s67 = sphi 0, %s66
    %s81 = sphi 0, %s67
    %s87 = sphi 0, %s89
    %s90 = sphi 0, %s87
    %s91 = sphi 0, %s90
    %s107 = sphi 0, %s91
  $region4: #{_forward.1} parent=0 // loop_header_branch
    %12 = sbr.rel (%p10) target = $region8
  $region5: #{_forward.1} parent=0 // loop_body
    %s14 = ssub.s32 %s9, 1
    %s15 = ssub.s32 %s9, 2
    %s16 = sadd.s32 %s9, 1
    %s17 = ssub.s32 %s9, %s16
    %p18 = scmp.eq.s32.totalorder %s17, 0
    %s20 = sadd.s32 %s19, 1
    %s21 = scalar_select %p18, %s19, %s20
    %p24 = pneg %p18
    %p25 = scmp.eq.s32.totalorder %s9, 1
    %p26 = por %p24, %p25
    %p27 = scmp.ne.s32.totalorder %s19, %s22
    %p28 = scmp.eq.s32.totalorder %s9, 0
    %p29 = por %p27, %p28
    %p30 = scmp.ne.s32.totalorder %s19, %s22
    %p31 = scmp.eq.s32.totalorder %s14, 1
    %p32 = por %p30, %p31
    %p33 = scmp.ne.s32.totalorder %s22, %s23
    %p34 = scmp.eq.s32.totalorder %s14, 0
    %p35 = por %p33, %p34
    %p36 = scmp.ne.s32.totalorder %s22, %s23
    %p37 = scmp.eq.s32.totalorder %s15, 1
    %p38 = por %p36, %p37
    %p40 = scmp.ne.s32.totalorder %s23, %s39
    %p41 = scmp.eq.s32.totalorder %s15, 0
    %p42 = por %p40, %p41
    %s44 = sadd.s32 %s43, 1
    %p47 = scmp.eq.s32.totalorder %s9, 1
    %p48 = scmp.ne.s32.totalorder %s43, %s45
    %p49 = scmp.eq.s32.totalorder %s9, 0
    %p50 = por %p48, %p49
    %p51 = scmp.ne.s32.totalorder %s43, %s45
    %p52 = scmp.eq.s32.totalorder %s14, 1
    %p53 = por %p51, %p52
    %p54 = scmp.ne.s32.totalorder %s45, %s46
    %p55 = scmp.eq.s32.totalorder %s14, 0
    %p56 = por %p54, %p55
    %p57 = scmp.ne.s32.totalorder %s45, %s46
    %p58 = scmp.eq.s32.totalorder %s15, 1
    %p59 = por %p57, %p58
    %p61 = scmp.ne.s32.totalorder %s46, %s60
    %p62 = scmp.eq.s32.totalorder %s15, 0
    %p63 = por %p61, %p62
    %s65 = sadd.s32 %s64, 1
    %p68 = scmp.eq.s32.totalorder %s9, 1
    %p69 = scmp.ne.s32.totalorder %s64, %s66
    %p70 = scmp.eq.s32.totalorder %s9, 0
    %p71 = por %p69, %p70
    %p72 = scmp.ne.s32.totalorder %s64, %s66
    %p73 = scmp.eq.s32.totalorder %s14, 1
    %p74 = por %p72, %p73
    %p75 = scmp.ne.s32.totalorder %s66, %s67
    %p76 = scmp.eq.s32.totalorder %s14, 0
    %p77 = por %p75, %p76
    %p78 = scmp.ne.s32.totalorder %s66, %s67
    %p79 = scmp.eq.s32.totalorder %s15, 1
    %p80 = por %p78, %p79
    %p82 = scmp.ne.s32.totalorder %s67, %s81
    %p83 = scmp.eq.s32.totalorder %s15, 0
    %p84 = por %p82, %p83
    %s85 = ssub.s32 %s9, %s16
    %p86 = scmp.eq.s32.totalorder %s85, 0
    %s88 = sadd.s32 %s87, 1
    %s89 = scalar_select %p86, %s87, %s88
    %p92 = pneg %p86
    %p93 = scmp.eq.s32.totalorder %s9, 1
    %p94 = por %p92, %p93
    %p95 = scmp.ne.s32.totalorder %s87, %s90
    %p96 = scmp.eq.s32.totalorder %s9, 0
    %p97 = por %p95, %p96
    %p98 = scmp.ne.s32.totalorder %s87, %s90
    %p99 = scmp.eq.s32.totalorder %s14, 1
    %p100 = por %p98, %p99
    %p101 = scmp.ne.s32.totalorder %s90, %s91
    %p102 = scmp.eq.s32.totalorder %s14, 0
    %p103 = por %p101, %p102
    %p104 = scmp.ne.s32.totalorder %s90, %s91
    %p105 = scmp.eq.s32.totalorder %s15, 1
    %p106 = por %p104, %p105
    %p108 = scmp.ne.s32.totalorder %s91, %s107
    %p109 = scmp.eq.s32.totalorder %s15, 0
    %p110 = por %p108, %p109
    %p111 = scmp.le.s32.totalorder 1, %s9
    %p112 = scmp.lt.s32.totalorder %s9, 3
    %p113 = pnand %p111, %p112
    %p114 = pneg %p113
    // Predicated region
    $region9: #{_forward.1} parent=5 // pred_check
      _
    $region10: #{_forward.1} parent=5 // pred_check_branch
      %116 = sbr.rel (%p113) target = $region12
    $region11: #{_forward.1} parent=5 // pred_region
      %s117 = ssub.s32 %s9, 1
      // Predicated region
      $region13: #{_forward.1} parent=11 // pred_check
        %p118 = pneg %p56
      $region14: #{_forward.1} parent=11 // pred_check_branch
        %120 = sbr.rel (%p118) target = $region16
      $region15: #{_forward.1} parent=11 // pred_region
        _
      $region16: #{_forward.1} parent=11 // pred_fallthru
        _
      // Predicated region
      $region17: #{_forward.1} parent=11 // pred_check
        %p121 = pneg %p77
      $region18: #{_forward.1} parent=11 // pred_check_branch
        %123 = sbr.rel (%p121) target = $region20
      $region19: #{_forward.1} parent=11 // pred_region
        _
      $region20: #{_forward.1} parent=11 // pred_fallthru
        _
    $region12: #{_forward.1} parent=5 // pred_fallthru
      _
    %p124 = scmp.lt.s32.totalorder %s9, 2
    // Predicated region
    $region21: #{_forward.1} parent=5 // pred_check
      %p125 = pneg %p124
    $region22: #{_forward.1} parent=5 // pred_check_branch
      %127 = sbr.rel (%p125) target = $region24
    $region23: #{_forward.1} parent=5 // pred_region
      // Predicated region
      $region25: #{_forward.1} parent=23 // pred_check
        %p128 = pneg %p29
      $region26: #{_forward.1} parent=23 // pred_check_branch
        %130 = sbr.rel (%p128) target = $region28
      $region27: #{_forward.1} parent=23 // pred_region
        %p131 = scmp.lt.s32.totalorder %s9, 1
        %s132 = scalar_select %p131, %s9, 1
        %s133 = smul.addr %s132, 3
        %s134 = smul.addr %s133, 4
        %s135 = scalar_lea.vmem %s0, %s134
      $region28: #{_forward.1} parent=23 // pred_fallthru
        _
    $region24: #{_forward.1} parent=5 // pred_fallthru
      _
    %p136 = scmp.le.s32.totalorder 1, %s9
    %p137 = scmp.lt.s32.totalorder %s9, 3
    %p138 = pnand %p136, %p137
    %p139 = pneg %p138
    // Predicated region
    $region29: #{_forward.1} parent=5 // pred_check
      _
    $region30: #{_forward.1} parent=5 // pred_check_branch
      %141 = sbr.rel (%p138) target = $region32
    $region31: #{_forward.1} parent=5 // pred_region
      %s142 = ssub.s32 %s9, 1
      %p143 = scmp.lt.s32.totalorder %s14, 1
      %s144 = scalar_select %p143, %s14, 1
      %s145 = smul.addr %s144, 3
      %s146 = smul.addr %s145, 4
      %s147 = scalar_lea.vmem %s0, %s146
      %p148 = pneg %p35
      %p149 = pneg %p32
      %p150 = pneg %p56
      %p151 = pneg %p53
      %p152 = pneg %p77
      %p153 = pneg %p74
      %p154 = pneg %p103
      %p155 = pneg %p100
      %p156 = scmp.lt.s32.totalorder %s14, 1
      %s157 = scalar_select %p156, %s14, 1
      %s158 = smul.addr %s157, 2
      %s159 = smul.addr %s158, 8
      %s160 = scalar_lea.vmem %s3, %s159
      %p161 = scmp.lt.s32.totalorder %s14, 1
      %s162 = scalar_select %p161, %s14, 1
      %s163 = smul.addr %s162, 3
      %s164 = smul.addr %s163, 4
      %s165 = scalar_lea.vmem %s0, %s164
      %p166 = scmp.lt.s32.totalorder %s14, 1
      %s167 = scalar_select %p166, %s14, 1
      %s168 = smul.addr %s167, 2
      %s169 = smul.addr %s168, 8
      %s170 = scalar_lea.vmem %s3, %s169
      %v172 = vld [vmem:[%s165] sm:$0xf]
      %v173 = vld [vmem:[%s165 + $0x4] sm:$0xf]
      %v174 = vld [vmem:[%s165 + $0x8] sm:$0x1]
      %v175 = vld [vmem:[%s1] sm:$0xf]
      %v176 = vld [vmem:[%s1 + $0x4] sm:$0xf]
      %v177 = vld [vmem:[%s1 + $0x8] sm:$0xf]
      %v178 = vld [vmem:[%s1 + $0xc] sm:$0xf]
      %v179 = vld [vmem:[%s1 + $0x10] sm:$0xf]
      %v180 = vld [vmem:[%s1 + $0x14] sm:$0xf]
      %v181 = vld [vmem:[%s1 + $0x18] sm:$0xf]
      %v182 = vld [vmem:[%s1 + $0x1c] sm:$0xf]
      %v183 = vld [vmem:[%s1 + $0x20] sm:$0xf]
      %s184 = scalar_lea.vmem %s1, 36
      %v185 = vld [vmem:[%s184] sm:$0xf]
      %v186 = vld [vmem:[%s184 + $0x4] sm:$0xf]
      %v187 = vld [vmem:[%s184 + $0x8] sm:$0xf]
      %v188 = vld [vmem:[%s184 + $0xc] sm:$0xf]
      %v189 = vld [vmem:[%s184 + $0x10] sm:$0xf]
      %v190 = vld [vmem:[%s184 + $0x14] sm:$0xf]
      %v191 = vld [vmem:[%s184 + $0x18] sm:$0xf]
      %v192 = vld [vmem:[%s184 + $0x1c] sm:$0xf]
      %v193 = vld [vmem:[%s184 + $0x20] sm:$0xf]
      %v197 = vunpack.c.l.b16 %v172
      %v198 = vunpack.c.l.b16 %v173
      %v199 = vunpack.c.l.b16 %v174
      %v200 = vpack.c.b16 %v198, %v197
      %v201 = vpack.c.b16 %v199, %v199
      %vm202 = vsmask.f32 7424
      %v204 = vshrl.u32 %v200, 16
      %v206 = vshll.u32 %v200, 16
      %v208 = vrot.slane %v206, 1
      %v209 = vor.u32 %v204, %v208
      %v211 = vshll.u32 %v201, 16
      %v213 = vrot.slane %v211, 1
      %v214 = vsel %vm202, %v209, %v213
      %v224 = vunpack.c.l.b16 %v185
      %v225 = vunpack.c.l.b16 %v186
      %v226 = vunpack.c.l.b16 %v187
      %v227 = vunpack.c.l.b16 %v188
      %v228 = vunpack.c.l.b16 %v189
      %v229 = vunpack.c.l.b16 %v190
      %v230 = vunpack.c.l.b16 %v191
      %v231 = vunpack.c.l.b16 %v192
      %v232 = vunpack.c.l.b16 %v193
      %v233 = vpack.c.b16 %v225, %v224
      %v234 = vpack.c.b16 %v227, %v226
      %v235 = vpack.c.b16 %v229, %v228
      %v236 = vpack.c.b16 %v231, %v230
      %v237 = vpack.c.b16 %v232, %v232
      %vm242 = vcmask 588800
      %v244 = vsel %vm242, %v214, 0
      %vm246 = vcmask 1043456
      %v248 = vsel %vm246, %v237, 0
      %250 = vmatprep.subr.bf16.mxu0 0
      %251 = vmatpush1.bf16.msra.mxu0 %v233
      %252 = vmatprep.subr.bf16.mxu0 0
      %253 = vmatpush1.bf16.msra.mxu0 %v234
      %254 = vmatprep.subr.bf16.mxu0 0
      %255 = vmatpush1.bf16.msra.mxu0 %v235
      %256 = vmatprep.subr.bf16.mxu0 0
      %257 = vmatpush1.bf16.msra.mxu0 %v236
      %258 = vmatprep.subr.bf16.mxu0 0
      %259 = vmatpush1.bf16.msra.mxu0 %v248
      %260 = vmatprep.subr.bf16.mxu0 0
      %261 = vmatpush1.bf16.msra.mxu0 0
      %262 = vmatprep.subr.bf16.mxu0 0
      %263 = vmatpush1.bf16.msra.mxu0 0
      %264 = vmatprep.subr.bf16.mxu0 0
      %265 = vmatpush1.bf16.msra.mxu0 0
      %266 = vmatprep.subr.bf16.mxu0 0
      %267 = vmatpush1.bf16.msra.mxu0 0
      %268 = vmatprep.subr.bf16.mxu0 0
      %269 = vmatpush1.bf16.msra.mxu0 0
      %270 = vmatprep.subr.bf16.mxu0 0
      %271 = vmatpush1.bf16.msra.mxu0 0
      %272 = vmatprep.subr.bf16.mxu0 0
      %273 = vmatpush1.bf16.msra.mxu0 0
      %274 = vmatprep.subr.bf16.mxu0 0
      %275 = vmatpush1.bf16.msra.mxu0 0
      %276 = vmatprep.subr.bf16.mxu0 0
      %277 = vmatpush1.bf16.msra.mxu0 0
      %278 = vmatprep.subr.bf16.mxu0 0
      %279 = vmatpush1.bf16.msra.mxu0 0
      %280 = vmatprep.subr.bf16.mxu0 0
      %281 = vmatpush1.bf16.msra.mxu0 0
      %282 = vmatprep.mubr.bf16.mxu0 0
      %283 = vmatmul.mubr.bf16.gmra.mrb[0].mxu0 %v244
      %v284 = vpop.f32.mrb[0].mxu0
      %v285 = vadd.f32 0.0, %v284
      %v286 = vpop.f32.mrb[0].mxu0
      %v287 = vpop.f32.mrb[0].mxu0
      %v288 = vadd.f32 0.0, %v287
      %v289 = vpop.f32.mrb[0].mxu0
      %290 = vdwg.mxu0
      %v300 = vunpack.c.l.b16 %v175
      %v301 = vunpack.c.l.b16 %v176
      %v302 = vunpack.c.l.b16 %v177
      %v303 = vunpack.c.l.b16 %v178
      %v304 = vunpack.c.l.b16 %v179
      %v305 = vunpack.c.l.b16 %v180
      %v306 = vunpack.c.l.b16 %v181
      %v307 = vunpack.c.l.b16 %v182
      %v308 = vunpack.c.l.b16 %v183
      %v309 = vpack.c.b16 %v301, %v300
      %v310 = vpack.c.b16 %v303, %v302
      %v311 = vpack.c.b16 %v305, %v304
      %v312 = vpack.c.b16 %v307, %v306
      %v313 = vpack.c.b16 %v308, %v308
      %v318 = vsel %vm242, %v200, 0
      %v321 = vsel %vm246, %v313, 0
      %323 = vmatprep.subr.bf16.mxu0 0
      %324 = vmatpush1.bf16.msra.mxu0 %v309
      %325 = vmatprep.subr.bf16.mxu0 0
      %326 = vmatpush1.bf16.msra.mxu0 %v310
      %327 = vmatprep.subr.bf16.mxu0 0
      %328 = vmatpush1.bf16.msra.mxu0 %v311
      %329 = vmatprep.subr.bf16.mxu0 0
      %330 = vmatpush1.bf16.msra.mxu0 %v312
      %331 = vmatprep.subr.bf16.mxu0 0
      %332 = vmatpush1.bf16.msra.mxu0 %v321
      %333 = vmatprep.subr.bf16.mxu0 0
      %334 = vmatpush1.bf16.msra.mxu0 0
      %335 = vmatprep.subr.bf16.mxu0 0
      %336 = vmatpush1.bf16.msra.mxu0 0
      %337 = vmatprep.subr.bf16.mxu0 0
      %338 = vmatpush1.bf16.msra.mxu0 0
      %339 = vmatprep.subr.bf16.mxu0 0
      %340 = vmatpush1.bf16.msra.mxu0 0
      %341 = vmatprep.subr.bf16.mxu0 0
      %342 = vmatpush1.bf16.msra.mxu0 0
      %343 = vmatprep.subr.bf16.mxu0 0
      %344 = vmatpush1.bf16.msra.mxu0 0
      %345 = vmatprep.subr.bf16.mxu0 0
      %346 = vmatpush1.bf16.msra.mxu0 0
      %347 = vmatprep.subr.bf16.mxu0 0
      %348 = vmatpush1.bf16.msra.mxu0 0
      %349 = vmatprep.subr.bf16.mxu0 0
      %350 = vmatpush1.bf16.msra.mxu0 0
      %351 = vmatprep.subr.bf16.mxu0 0
      %352 = vmatpush1.bf16.msra.mxu0 0
      %353 = vmatprep.subr.bf16.mxu0 0
      %354 = vmatpush1.bf16.msra.mxu0 0
      %355 = vmatprep.mubr.bf16.mxu0 0
      %356 = vmatmul.mubr.bf16.gmra.mrb[0].mxu0 %v318
      %v357 = vpop.f32.mrb[0].mxu0
      %v358 = vadd.f32 %v285, %v357
      %v359 = vpop.f32.mrb[0].mxu0
      %v360 = vpop.f32.mrb[0].mxu0
      %v361 = vadd.f32 %v288, %v360
      %v362 = vpop.f32.mrb[0].mxu0
      %363 = vdwg.mxu0
      %s364 = scalar_lea.vmem %s1, 72
      %v365 = vld [vmem:[%s364] sm:$0xf]
      %v366 = vld [vmem:[%s364 + $0x4] sm:$0xf]
      %v367 = vld [vmem:[%s364 + $0x8] sm:$0xf]
      %v368 = vld [vmem:[%s364 + $0xc] sm:$0xf]
      %v369 = vld [vmem:[%s364 + $0x10] sm:$0xf]
      %v370 = vld [vmem:[%s364 + $0x14] sm:$0xf]
      %v371 = vld [vmem:[%s364 + $0x18] sm:$0xf]
      %v372 = vld [vmem:[%s364 + $0x1c] sm:$0xf]
      %v373 = vld [vmem:[%s364 + $0x20] sm:$0xf]
      %vm374 = vcmask 1046528
      %v375 = vrot.slane %v200, 1
      %v376 = vrot.slane %v201, 1
      %v377 = vsel %vm374, %v375, %v376
      %v387 = vunpack.c.l.b16 %v365
      %v388 = vunpack.c.l.b16 %v366
      %v389 = vunpack.c.l.b16 %v367
      %v390 = vunpack.c.l.b16 %v368
      %v391 = vunpack.c.l.b16 %v369
      %v392 = vunpack.c.l.b16 %v370
      %v393 = vunpack.c.l.b16 %v371
      %v394 = vunpack.c.l.b16 %v372
      %v395 = vunpack.c.l.b16 %v373
      %v396 = vpack.c.b16 %v388, %v387
      %v397 = vpack.c.b16 %v390, %v389
      %v398 = vpack.c.b16 %v392, %v391
      %v399 = vpack.c.b16 %v394, %v393
      %v400 = vpack.c.b16 %v395, %v395
      %v406 = vsel %vm242, %v377, 0
      %v409 = vsel %vm246, %v400, 0
      %411 = vmatprep.subr.bf16.mxu0 0
      %412 = vmatpush1.bf16.msra.mxu0 %v396
      %413 = vmatprep.subr.bf16.mxu0 0
      %414 = vmatpush1.bf16.msra.mxu0 %v397
      %415 = vmatprep.subr.bf16.mxu0 0
      %416 = vmatpush1.bf16.msra.mxu0 %v398
      %417 = vmatprep.subr.bf16.mxu0 0
      %418 = vmatpush1.bf16.msra.mxu0 %v399
      %419 = vmatprep.subr.bf16.mxu0 0
      %420 = vmatpush1.bf16.msra.mxu0 %v409
      %421 = vmatprep.subr.bf16.mxu0 0
      %422 = vmatpush1.bf16.msra.mxu0 0
      %423 = vmatprep.subr.bf16.mxu0 0
      %424 = vmatpush1.bf16.msra.mxu0 0
      %425 = vmatprep.subr.bf16.mxu0 0
      %426 = vmatpush1.bf16.msra.mxu0 0
      %427 = vmatprep.subr.bf16.mxu0 0
      %428 = vmatpush1.bf16.msra.mxu0 0
      %429 = vmatprep.subr.bf16.mxu0 0
      %430 = vmatpush1.bf16.msra.mxu0 0
      %431 = vmatprep.subr.bf16.mxu0 0
      %432 = vmatpush1.bf16.msra.mxu0 0
      %433 = vmatprep.subr.bf16.mxu0 0
      %434 = vmatpush1.bf16.msra.mxu0 0
      %435 = vmatprep.subr.bf16.mxu0 0
      %436 = vmatpush1.bf16.msra.mxu0 0
      %437 = vmatprep.subr.bf16.mxu0 0
      %438 = vmatpush1.bf16.msra.mxu0 0
      %439 = vmatprep.subr.bf16.mxu0 0
      %440 = vmatpush1.bf16.msra.mxu0 0
      %441 = vmatprep.subr.bf16.mxu0 0
      %442 = vmatpush1.bf16.msra.mxu0 0
      %443 = vmatprep.mubr.bf16.mxu0 0
      %444 = vmatmul.mubr.bf16.gmra.mrb[0].mxu0 %v406
      %v445 = vpop.f32.mrb[0].mxu0
      %v446 = vadd.f32 0.0, %v445
      %v447 = vpop.f32.mrb[0].mxu0
      %v448 = vpop.f32.mrb[0].mxu0
      %v449 = vadd.f32 0.0, %v448
      %v450 = vpop.f32.mrb[0].mxu0
      %451 = vdwg.mxu0
      %v452 = vadd.f32 %v358, %v446
      %v453 = vadd.f32 %v361, %v449
      %v454 = vld [vmem:[%s2] sm:$0x1]
      %v456 = vlaneseq
      %v457 = vshrl.u32 %v456, 7
      %v458 = vsub.s32 0, %v457
      %v459 = vrot.slane %v454, %v458
      %v461 = vadd.f32 %v452, %v459
      %v462 = vadd.f32 %v453, %v459
      %vm463 = vcmask 523264
      %464 = vst.msk [vmem:[%s170] sm:$0xff] %vm463, %v461
      %465 = vst.msk [vmem:[%s170 + $0x8] sm:$0xff] %vm463, %v462
      %p466 = scmp.lt.s32.totalorder %s14, 1
      %s467 = scalar_select %p466, %s14, 1
      %s468 = smul.addr %s467, 2
      %s469 = smul.addr %s468, 8
      %s470 = scalar_lea.vmem %s3, %s469
      // Predicated region
      $region33: #{_forward.1} parent=31 // pred_check
        %p471 = pneg %p100
      $region34: #{_forward.1} parent=31 // pred_check_branch
        %473 = sbr.rel (%p471) target = $region36
      $region35: #{_forward.1} parent=31 // pred_region
        _
      $region36: #{_forward.1} parent=31 // pred_fallthru
        _
    $region32: #{_forward.1} parent=5 // pred_fallthru
      _
    %p474 = scmp.le.s32.totalorder 2, %s9
    // Predicated region
    $region37: #{_forward.1} parent=5 // pred_check
      %p475 = pneg %p474
    $region38: #{_forward.1} parent=5 // pred_check_branch
      %477 = sbr.rel (%p475) target = $region40
    $region39: #{_forward.1} parent=5 // pred_region
      %s478 = ssub.s32 %s9, 2
      // Predicated region
      $region41: #{_forward.1} parent=39 // pred_check
        %p479 = pneg %p106
      $region42: #{_forward.1} parent=39 // pred_check_branch
        %481 = sbr.rel (%p479) target = $region44
      $region43: #{_forward.1} parent=39 // pred_region
        %p482 = scmp.lt.s32.totalorder %s15, 1
        %s483 = scalar_select %p482, %s15, 1
        %s484 = smul.addr %s483, 2
        %s485 = smul.addr %s484, 8
        %s486 = scalar_lea.vmem %s3, %s485
      $region44: #{_forward.1} parent=39 // pred_fallthru
        _
    $region40: #{_forward.1} parent=5 // pred_fallthru
      _
  $region6: #{_forward.1} parent=0 // loop_footer
    %s13 = sadd.s32 1, %s9
  $region7: #{_forward.1} parent=0 // loop_footer_branch
    %8 = sbr.rel target = $region3
  $region8: #{_forward.1} parent=0 // loop_exit
    _

</llo_original>
